<compile_context>
chip_gen: v6e
topology: v6e:2x2x1
jax: 0.10.0
libtpu: 0.0.40
codegen_flags: <defaults>
</compile_context>

<pallas_src>
import functools

import jax
import jax.numpy as jnp
from jax.experimental import pallas as pl
from jax.experimental.pallas import tpu as pltpu


def _plane_min(x):
    # per-plane min over the last two (spatial) axes, keepdims -> (G, 1, 1)
    return jnp.min(jnp.min(x, axis=-1, keepdims=True), axis=-2, keepdims=True)


def _plane_max(x):
    return jnp.max(jnp.max(x, axis=-1, keepdims=True), axis=-2, keepdims=True)


def _laplacian2d_kernel(x_ref, o_ref, *, learning_rate: float, itk_scale: bool):
    # x_ref / o_ref block shape: (G, H, W) float32 — G planes per grid step.
    x = x_ref[...]

    # Replicate-padded 5-point stencil
    # (== F.pad(..., 'replicate') + depthwise conv with [[0,1,0],[1,-4,1],[0,1,0]] / 4).
    up = jnp.concatenate([x[:, :1, :], x[:, :-1, :]], axis=1)
    down = jnp.concatenate([x[:, 1:, :], x[:, -1:, :]], axis=1)
    left = jnp.concatenate([x[:, :, :1], x[:, :, :-1]], axis=2)
    right = jnp.concatenate([x[:, :, 1:], x[:, :, -1:]], axis=2)
    lap = (up + down + left + right - 4.0 * x) * 0.25

    if itk_scale:
        lap_min = _plane_min(lap)
        lap_max = _plane_max(lap)
        img_min = _plane_min(x)
        img_max = _plane_max(x)
        # Guard degenerate (constant) planes where lap_max == lap_min.
        # (The PyTorch original would produce NaN here.)
        denom = lap_max - lap_min
        denom = jnp.where(denom == 0.0, 1.0, denom)
        # Fold the whole rescale into ONE per-plane scalar; per-element work is
        # then a single multiply-subtract.  (approx=True would push the divide
        # to the EUP; kept exact to stay bit-close to the reference.)
        scale = learning_rate * (img_max - img_min) * pl.reciprocal(denom, approx=False)
        scaled = x - scale * (lap - lap_min)
        scaled = scaled - _plane_min(scaled)
    else:
        scaled = x - learning_rate * lap

    o_ref[...] = scaled.astype(o_ref.dtype)


def _choose_planes_per_block(num_planes: int, bytes_per_plane: int) -> int:
    """Pick G (planes per block): big blocks, but <= ~2 MiB of plane data per
    step (keeps double-buffered in+out + temporaries well under the scoped VMEM
    limit on every generation) and keep >= 2 grid steps when possible so both
    v7x TensorCores get work."""
    target_bytes = 2 * 1024 * 1024
    g = max(1, min(num_planes, target_bytes // max(bytes_per_plane, 1)))
    if num_planes >= 2:
        g = max(1, min(g, num_planes // 2))
    # Round g down to a divisor of num_planes so the grid tiles exactly.
    while num_planes % g != 0:
        g -= 1
    return g


def laplacian_filter_2d(image, learning_rate: float = 1.0, itk_scale: bool = True):
    """Forward pass of LaplacianFilter(dims=2) for NCHW float32 input."""
    B, C, H, W = image.shape
    P = B * C
    x = image.reshape(P, H, W)  # free collapse of leading dims

    bytes_per_plane = H * W * image.dtype.itemsize
    G = _choose_planes_per_block(P, bytes_per_plane)
    num_blocks = P // G

    kernel = functools.partial(
        _laplacian2d_kernel,
        learning_rate=float(learning_rate),
        itk_scale=bool(itk_scale),
    )

    n_elem = P * H * W
    cost = pl.CostEstimate(
        flops=10 * n_elem,
        transcendentals=0,
        bytes_accessed=2 * n_elem * image.dtype.itemsize,
    )

    out = pl.pallas_call(
        kernel,
        out_shape=jax.ShapeDtypeStruct((P, H, W), image.dtype),
        grid=(num_blocks,),
        in_specs=[pl.BlockSpec((G, H, W), lambda i: (i, 0, 0))],
        out_specs=pl.BlockSpec((G, H, W), lambda i: (i, 0, 0)),
        compiler_params=pltpu.CompilerParams(
            dimension_semantics=("parallel",),
            vmem_limit_bytes=32 * 1024 * 1024,
        ),
        cost_estimate=cost,
    )(x)
    return out.reshape(B, C, H, W)


def _reference_laplacian_filter_2d(image, learning_rate=1.0, itk_scale=True):
    """Plain-JAX reference mirroring the PyTorch forward (dims=2)."""
    xp = jnp.pad(image, ((0, 0), (0, 0), (1, 1), (1, 1)), mode="edge")
    lap = (
        xp[:, :, :-2, 1:-1]
        + xp[:, :, 2:, 1:-1]
        + xp[:, :, 1:-1, :-2]
        + xp[:, :, 1:-1, 2:]
        - 4.0 * image
    ) * 0.25
    if not itk_scale:
        return image - learning_rate * lap
    lap_min = lap.min(axis=(2, 3), keepdims=True)
    lap_max = lap.max(axis=(2, 3), keepdims=True)
    img_min = image.min(axis=(2, 3), keepdims=True)
    img_max = image.max(axis=(2, 3), keepdims=True)
    denom = lap_max - lap_min
    denom = jnp.where(denom == 0.0, 1.0, denom)
    lap_scaled = (lap - lap_min) / denom * (img_max - img_min)
    scaled = image - learning_rate * lap_scaled
    return scaled - scaled.min(axis=(2, 3), keepdims=True)


if __name__ == "__main__":
    key = jax.random.PRNGKey(0)
    B, C, H, W = 2, 4, 16, 16
    x = jax.random.normal(key, (B, C, H, W), dtype=jnp.float32)

    # itk_scale=True path
    out = laplacian_filter_2d(x, learning_rate=1.0, itk_scale=True)
    out = jax.block_until_ready(out)
    ref = _reference_laplacian_filter_2d(x, learning_rate=1.0, itk_scale=True)
    assert out.shape == (B, C, H, W)
    assert jnp.allclose(out, ref, atol=1e-4, rtol=1e-5), "mismatch vs JAX reference (itk_scale=True)"

    # itk_scale=False path
    out2 = laplacian_filter_2d(x, learning_rate=0.5, itk_scale=False)
    out2 = jax.block_until_ready(out2)
    ref2 = _reference_laplacian_filter_2d(x, learning_rate=0.5, itk_scale=False)
    assert jnp.allclose(out2, ref2, atol=1e-4, rtol=1e-5), "mismatch vs JAX reference (itk_scale=False)"

    print("KERNEL_OK")
</pallas_src>

<mosaic_0001>
module attributes {stable_mosaic.version = 11 : i64} {
  func.func @_laplacian2d_kernel(%arg0: i32, %arg1: memref<4x16x16xf32, #tpu.memory_space<vmem>>, %arg2: memref<4x16x16xf32, #tpu.memory_space<vmem>>) attributes {dimension_semantics = [#tpu.dimension_semantics<parallel>], iteration_bounds = array<i64: 2>, scalar_prefetch = 0 : i64, scratch_operands = 0 : i64, tpu.core_type = #tpu.core_type<tc>, window_params = [{transform_indices = @transform_0, window_bounds = array<i64: 4, 16, 16>}, {transform_indices = @transform_1, window_bounds = array<i64: 4, 16, 16>}]} {
    %c0 = arith.constant 0 : index
    %c0_0 = arith.constant 0 : index
    %c0_1 = arith.constant 0 : index
    %0 = vector.load %arg1[%c0, %c0_0, %c0_1] : memref<4x16x16xf32, #tpu.memory_space<vmem>>, vector<4x16x16xf32>
    %1 = vector.extract_strided_slice %0 {offsets = [0, 0, 0], sizes = [4, 1, 16], strides = [1, 1, 1]} : vector<4x16x16xf32> to vector<4x1x16xf32>
    %2 = vector.extract_strided_slice %0 {offsets = [0, 0, 0], sizes = [4, 15, 16], strides = [1, 1, 1]} : vector<4x16x16xf32> to vector<4x15x16xf32>
    %3 = tpu.concatenate %1, %2 in 1 : vector<4x1x16xf32>, vector<4x15x16xf32> -> vector<4x16x16xf32>
    %4 = vector.extract_strided_slice %0 {offsets = [0, 1, 0], sizes = [4, 15, 16], strides = [1, 1, 1]} : vector<4x16x16xf32> to vector<4x15x16xf32>
    %5 = vector.extract_strided_slice %0 {offsets = [0, 15, 0], sizes = [4, 1, 16], strides = [1, 1, 1]} : vector<4x16x16xf32> to vector<4x1x16xf32>
    %6 = tpu.concatenate %4, %5 in 1 : vector<4x15x16xf32>, vector<4x1x16xf32> -> vector<4x16x16xf32>
    %7 = vector.extract_strided_slice %0 {offsets = [0, 0, 0], sizes = [4, 16, 1], strides = [1, 1, 1]} : vector<4x16x16xf32> to vector<4x16x1xf32>
    %8 = vector.extract_strided_slice %0 {offsets = [0, 0, 0], sizes = [4, 16, 15], strides = [1, 1, 1]} : vector<4x16x16xf32> to vector<4x16x15xf32>
    %9 = tpu.concatenate %7, %8 in 2 : vector<4x16x1xf32>, vector<4x16x15xf32> -> vector<4x16x16xf32>
    %10 = vector.extract_strided_slice %0 {offsets = [0, 0, 1], sizes = [4, 16, 15], strides = [1, 1, 1]} : vector<4x16x16xf32> to vector<4x16x15xf32>
    %11 = vector.extract_strided_slice %0 {offsets = [0, 0, 15], sizes = [4, 16, 1], strides = [1, 1, 1]} : vector<4x16x16xf32> to vector<4x16x1xf32>
    %12 = tpu.concatenate %10, %11 in 2 : vector<4x16x15xf32>, vector<4x16x1xf32> -> vector<4x16x16xf32>
    %13 = arith.addf %3, %6 : vector<4x16x16xf32>
    %14 = arith.addf %13, %9 : vector<4x16x16xf32>
    %15 = arith.addf %14, %12 : vector<4x16x16xf32>
    %cst = arith.constant 4.000000e+00 : f32
    %16 = vector.broadcast %cst : f32 to vector<4x16x16xf32>
    %17 = arith.mulf %16, %0 : vector<4x16x16xf32>
    %18 = arith.subf %15, %17 : vector<4x16x16xf32>
    %cst_2 = arith.constant 2.500000e-01 : f32
    %19 = vector.broadcast %cst_2 : f32 to vector<4x16x16xf32>
    %20 = arith.mulf %18, %19 : vector<4x16x16xf32>
    %cst_3 = arith.constant dense<0x7F800000> : vector<4x16xf32>
    %21 = vector.multi_reduction <minimumf>, %20, %cst_3 [2] : vector<4x16x16xf32> to vector<4x16xf32>
    %22 = vector.shape_cast %21 : vector<4x16xf32> to vector<4x16x1xf32>
    %cst_4 = arith.constant dense<0x7F800000> : vector<4x1xf32>
    %23 = vector.multi_reduction <minimumf>, %22, %cst_4 [1] : vector<4x16x1xf32> to vector<4x1xf32>
    %24 = vector.shape_cast %23 : vector<4x1xf32> to vector<4x1x1xf32>
    %cst_5 = arith.constant dense<0xFF800000> : vector<4x16xf32>
    %25 = vector.multi_reduction <maximumf>, %20, %cst_5 [2] : vector<4x16x16xf32> to vector<4x16xf32>
    %26 = vector.shape_cast %25 : vector<4x16xf32> to vector<4x16x1xf32>
    %cst_6 = arith.constant dense<0xFF800000> : vector<4x1xf32>
    %27 = vector.multi_reduction <maximumf>, %26, %cst_6 [1] : vector<4x16x1xf32> to vector<4x1xf32>
    %28 = vector.shape_cast %27 : vector<4x1xf32> to vector<4x1x1xf32>
    %cst_7 = arith.constant dense<0x7F800000> : vector<4x16xf32>
    %29 = vector.multi_reduction <minimumf>, %0, %cst_7 [2] : vector<4x16x16xf32> to vector<4x16xf32>
    %30 = vector.shape_cast %29 : vector<4x16xf32> to vector<4x16x1xf32>
    %cst_8 = arith.constant dense<0x7F800000> : vector<4x1xf32>
    %31 = vector.multi_reduction <minimumf>, %30, %cst_8 [1] : vector<4x16x1xf32> to vector<4x1xf32>
    %32 = vector.shape_cast %31 : vector<4x1xf32> to vector<4x1x1xf32>
    %cst_9 = arith.constant dense<0xFF800000> : vector<4x16xf32>
    %33 = vector.multi_reduction <maximumf>, %0, %cst_9 [2] : vector<4x16x16xf32> to vector<4x16xf32>
    %34 = vector.shape_cast %33 : vector<4x16xf32> to vector<4x16x1xf32>
    %cst_10 = arith.constant dense<0xFF800000> : vector<4x1xf32>
    %35 = vector.multi_reduction <maximumf>, %34, %cst_10 [1] : vector<4x16x1xf32> to vector<4x1xf32>
    %36 = vector.shape_cast %35 : vector<4x1xf32> to vector<4x1x1xf32>
    %37 = arith.subf %28, %24 : vector<4x1x1xf32>
    %cst_11 = arith.constant 0.000000e+00 : f32
    %38 = vector.broadcast %cst_11 : f32 to vector<4x1x1xf32>
    %39 = arith.cmpf oeq, %37, %38 : vector<4x1x1xf32>
    %cst_12 = arith.constant 1.000000e+00 : f32
    %40 = vector.broadcast %cst_12 : f32 to vector<4x1x1xf32>
    %41 = arith.select %39, %40, %37 : vector<4x1x1xi1>, vector<4x1x1xf32>
    %42 = arith.subf %36, %32 : vector<4x1x1xf32>
    %cst_13 = arith.constant 1.000000e+00 : f32
    %43 = vector.broadcast %cst_13 : f32 to vector<4x1x1xf32>
    %44 = arith.mulf %43, %42 : vector<4x1x1xf32>
    %45 = tpu.reciprocal %41 : vector<4x1x1xf32> -> vector<4x1x1xf32>
    %46 = arith.mulf %44, %45 : vector<4x1x1xf32>
    %47 = vector.broadcast %24 : vector<4x1x1xf32> to vector<4x16x16xf32>
    %48 = arith.subf %20, %47 : vector<4x16x16xf32>
    %49 = vector.broadcast %46 : vector<4x1x1xf32> to vector<4x16x16xf32>
    %50 = arith.mulf %49, %48 : vector<4x16x16xf32>
    %51 = arith.subf %0, %50 : vector<4x16x16xf32>
    %cst_14 = arith.constant dense<0x7F800000> : vector<4x16xf32>
    %52 = vector.multi_reduction <minimumf>, %51, %cst_14 [2] : vector<4x16x16xf32> to vector<4x16xf32>
    %53 = vector.shape_cast %52 : vector<4x16xf32> to vector<4x16x1xf32>
    %cst_15 = arith.constant dense<0x7F800000> : vector<4x1xf32>
    %54 = vector.multi_reduction <minimumf>, %53, %cst_15 [1] : vector<4x16x1xf32> to vector<4x1xf32>
    %55 = vector.shape_cast %54 : vector<4x1xf32> to vector<4x1x1xf32>
    %56 = vector.broadcast %55 : vector<4x1x1xf32> to vector<4x16x16xf32>
    %57 = arith.subf %51, %56 : vector<4x16x16xf32>
    %c0_16 = arith.constant 0 : index
    %c0_17 = arith.constant 0 : index
    %c0_18 = arith.constant 0 : index
    %58 = vector.load %arg2[%c0_16, %c0_17, %c0_18] : memref<4x16x16xf32, #tpu.memory_space<vmem>>, vector<4x16x16xf32>
    tpu.vector_store %arg2[%c0_16, %c0_17, %c0_18], %57 {strides = array<i32>} : memref<4x16x16xf32, #tpu.memory_space<vmem>>, vector<4x16x16xf32>,
    return
  }
  func.func @transform_0(%arg0: i32) -> (i32, i32, i32) {
    %c0_i32 = arith.constant 0 : i32
    %c0_i32_0 = arith.constant 0 : i32
    %c0_i32_1 = arith.constant 0 : i32
    return %arg0, %c0_i32, %c0_i32_0 : i32, i32, i32
  }
  func.func @transform_1(%arg0: i32) -> (i32, i32, i32) {
    %c0_i32 = arith.constant 0 : i32
    %c0_i32_0 = arith.constant 0 : i32
    %c0_i32_1 = arith.constant 0 : i32
    return %arg0, %c0_i32, %c0_i32_0 : i32, i32, i32
  }
}

</mosaic_0001>

<llo_original>
// kernel: tpu_custom_call.1
$region0: #{tpu_custom_call.1}
  #allocation0 [shape = 'u32[]', space=smem, size = 0x4, offset = 0x4, fixed_abs, tag = 'smem constant byte address 0x4 - core index']
  #allocation1 [shape = 'u32[144,128]{1,0:T(1,128)}', space=vmem, size = 0x12000, scoped, tag = 'internal scratch']
  %s0 = inlined_call_operand.hbm [shape: f32[8,16,16], index: 0, kind: input, shape index: {}]
  %s1 = inlined_call_operand.hbm [shape: f32[8,16,16], index: 1, kind: output, shape index: {}]
  %s2 = sld [smem:[#allocation0]]
  $region41: #{tpu_custom_call.1} parent=0
    _
  %s4 = ssub.s32 1, %s2
  %s5 = scalar_select 0, %s4, %s2
  $region1: #{tpu_custom_call.1} parent=0
    #allocation2 [shape = 'u8[65536]{0}', space=vmem, size = 0x10000, scoped, tag = 'input window, operand 0']
    #allocation3 [shape = 's32[2]{0}', space=sflag, size = 0x8, scoped, tag = 'scoped memory for tpu_custom_call.1']
    #allocation4 [shape = 's32[2]{0}', space=sflag, size = 0x8, scoped, tag = 'scoped memory for tpu_custom_call.1']
    #allocation5 [shape = 'u8[65536]{0}', space=vmem, size = 0x10000, scoped, tag = 'output window, operand 0']
    %6 = vsyncpa [#allocation3], 0
    %s7 = scalar_lea.sflag [#allocation3], 1
    %8 = vsyncpa %s7, 0
    %9 = vsyncpa [#allocation4], 0
    %s10 = scalar_lea.sflag [#allocation4], 1
    %11 = vsyncpa %s10, 0
    loop: start=0, step=1, limit=4
    $region2: #{tpu_custom_call.1} parent=1 // loop_pre_header
      _
    $region3: #{tpu_custom_call.1} parent=1 // loop_header
      %s13 = sphi 0, %s17
      %p14 = scmp.ge.s32.totalorder %s13, 4
      %s23 = sphi 0, %s25
      %s26 = sphi 0, %s23
      %s27 = sphi 0, %s26
      %s43 = sphi 0, %s27
      %s49 = sphi 0, %s51
      %s52 = sphi 0, %s49
      %s53 = sphi 0, %s52
      %s69 = sphi 0, %s53
    $region4: #{tpu_custom_call.1} parent=1 // loop_header_branch
      %16 = sbr.rel (%p14) target = $region8
    $region5: #{tpu_custom_call.1} parent=1 // loop_body
      %s18 = ssub.s32 %s13, 1
      %s19 = ssub.s32 %s13, 2
      %s20 = sadd.s32 %s13, 1
      %s21 = ssub.s32 %s13, %s20
      %p22 = scmp.eq.s32.totalorder %s21, 0
      %s24 = sadd.s32 %s23, 1
      %s25 = scalar_select %p22, %s23, %s24
      %p28 = pneg %p22
      %p29 = scmp.eq.s32.totalorder %s13, 1
      %p30 = por %p28, %p29
      %p31 = scmp.ne.s32.totalorder %s23, %s26
      %p32 = scmp.eq.s32.totalorder %s13, 0
      %p33 = por %p31, %p32
      %p34 = scmp.ne.s32.totalorder %s23, %s26
      %p35 = scmp.eq.s32.totalorder %s18, 1
      %p36 = por %p34, %p35
      %p37 = scmp.ne.s32.totalorder %s26, %s27
      %p38 = scmp.eq.s32.totalorder %s18, 0
      %p39 = por %p37, %p38
      %p40 = scmp.ne.s32.totalorder %s26, %s27
      %p41 = scmp.eq.s32.totalorder %s19, 1
      %p42 = por %p40, %p41
      %p44 = scmp.ne.s32.totalorder %s27, %s43
      %p45 = scmp.eq.s32.totalorder %s19, 0
      %p46 = por %p44, %p45
      %s47 = ssub.s32 %s13, %s20
      %p48 = scmp.eq.s32.totalorder %s47, 0
      %s50 = sadd.s32 %s49, 1
      %s51 = scalar_select %p48, %s49, %s50
      %p54 = pneg %p48
      %p55 = scmp.eq.s32.totalorder %s13, 1
      %p56 = por %p54, %p55
      %p57 = scmp.ne.s32.totalorder %s49, %s52
      %p58 = scmp.eq.s32.totalorder %s13, 0
      %p59 = por %p57, %p58
      %p60 = scmp.ne.s32.totalorder %s49, %s52
      %p61 = scmp.eq.s32.totalorder %s18, 1
      %p62 = por %p60, %p61
      %p63 = scmp.ne.s32.totalorder %s52, %s53
      %p64 = scmp.eq.s32.totalorder %s18, 0
      %p65 = por %p63, %p64
      %p66 = scmp.ne.s32.totalorder %s52, %s53
      %p67 = scmp.eq.s32.totalorder %s19, 1
      %p68 = por %p66, %p67
      %p70 = scmp.ne.s32.totalorder %s53, %s69
      %p71 = scmp.eq.s32.totalorder %s19, 0
      %p72 = por %p70, %p71
      %p73 = scmp.le.s32.totalorder 1, %s13
      %p74 = scmp.lt.s32.totalorder %s13, 3
      %p75 = pnand %p73, %p74
      %p76 = pneg %p75
      // Predicated region
      $region9: #{tpu_custom_call.1} parent=5 // pred_check
        _
      $region10: #{tpu_custom_call.1} parent=5 // pred_check_branch
        %78 = sbr.rel (%p75) target = $region12
      $region11: #{tpu_custom_call.1} parent=5 // pred_region
        %s79 = ssub.s32 %s13, 1
      $region12: #{tpu_custom_call.1} parent=5 // pred_fallthru
        _
      %p80 = scmp.lt.s32.totalorder %s13, 2
      // Predicated region
      $region13: #{tpu_custom_call.1} parent=5 // pred_check
        %p81 = pneg %p80
      $region14: #{tpu_custom_call.1} parent=5 // pred_check_branch
        %83 = sbr.rel (%p81) target = $region16
      $region15: #{tpu_custom_call.1} parent=5 // pred_region
        // Predicated region
        $region17: #{tpu_custom_call.1} parent=15 // pred_check
          %p84 = pneg %p33
        $region18: #{tpu_custom_call.1} parent=15 // pred_check_branch
          %86 = sbr.rel (%p84) target = $region20
        $region19: #{tpu_custom_call.1} parent=15 // pred_region
          %s87 = sand.u32 %s23, 1
          %s88 = scalar_lea.sflag [#allocation3], %s87
          %s89 = sand.u32 %s23, 1
          %s90 = smul.addr %s89, 64
          %s91 = scalar_lea.vmem [#allocation2], %s90
          %s92 = smul.u32 4, %s13
          %s94 = ssub.s32 1024, 1024
          %95 = vsyncadd %s88, %s94
          %s96 = smul.addr %s92, 2
          %s97 = smul.addr %s96, 128
          %s98 = scalar_lea.hbm %s0, %s97
          %s99 = sshll.u32 %s91, 4
          %s100 = int_to_ptr.vmem [resolvable:$true] %s99
          %105 = dma.hbm_to_vmem [thread:$0]  %s98, 1024, %s100, %s88, 128, 128, 8
        $region20: #{tpu_custom_call.1} parent=15 // pred_fallthru
          _
      $region16: #{tpu_custom_call.1} parent=5 // pred_fallthru
        _
      %p106 = scmp.le.s32.totalorder 1, %s13
      %p107 = scmp.lt.s32.totalorder %s13, 3
      %p108 = pnand %p106, %p107
      %p109 = pneg %p108
      // Predicated region
      $region21: #{tpu_custom_call.1} parent=5 // pred_check
        _
      $region22: #{tpu_custom_call.1} parent=5 // pred_check_branch
        %111 = sbr.rel (%p108) target = $region24
      $region23: #{tpu_custom_call.1} parent=5 // pred_region
        %s112 = ssub.s32 %s13, 1
        %s113 = sand.u32 %s26, 1
        %s114 = scalar_lea.sflag [#allocation3], %s113
        %s115 = sand.u32 %s26, 1
        %s116 = smul.addr %s115, 64
        %s117 = scalar_lea.vmem [#allocation2], %s116
        // Predicated region
        $region25: #{tpu_custom_call.1} parent=23 // pred_check
          %p118 = pneg %p39
        $region26: #{tpu_custom_call.1} parent=23 // pred_check_branch
          %120 = sbr.rel (%p118) target = $region28
        $region27: #{tpu_custom_call.1} parent=23 // pred_region
          %121 = dma.done %s114, 1024
        $region28: #{tpu_custom_call.1} parent=23 // pred_fallthru
          _
        %s122 = sand.u32 %s26, 1
        %s123 = scalar_lea.sflag [#allocation3], %s122
        %s124 = sand.u32 %s26, 1
        %s125 = smul.addr %s124, 64
        %s126 = scalar_lea.vmem [#allocation2], %s125
        %p127 = pneg %p39
        %p128 = pneg %p36
        %p129 = pneg %p65
        %p130 = pneg %p62
        %s131 = sand.u32 %s52, 1
        %s132 = scalar_lea.sflag [#allocation4], %s131
        %s133 = sand.u32 %s52, 1
        %s134 = smul.addr %s133, 64
        %s135 = scalar_lea.vmem [#allocation5], %s134
        %s136 = smul.u32 4, %s18
        %s137 = smul.u32 4, %s18
        %v138 = vld [vmem:[%s117] sm:$0xff]
        %v139 = vld [vmem:[%s117 + $0x8] sm:$0xff]
        %v140 = vld [vmem:[%s117 + $0x10] sm:$0xff]
        %v141 = vld [vmem:[%s117 + $0x18] sm:$0xff]
        %v142 = vld [vmem:[%s117 + $0x20] sm:$0xff]
        %v143 = vld [vmem:[%s117 + $0x28] sm:$0xff]
        %v144 = vld [vmem:[%s117 + $0x30] sm:$0xff]
        %v145 = vld [vmem:[%s117 + $0x38] sm:$0xff]
        %vm154 = vcmask 1040384
        %v155 = vrot.slane %v138, 7
        %v156 = vrot.slane %v139, 7
        %v157 = vsel %vm154, %v155, %v156
        %v158 = vrot.slane %v140, 7
        %v159 = vrot.slane %v141, 7
        %v160 = vsel %vm154, %v158, %v159
        %v161 = vrot.slane %v142, 7
        %v162 = vrot.slane %v143, 7
        %v163 = vsel %vm154, %v161, %v162
        %v164 = vrot.slane %v144, 7
        %v165 = vrot.slane %v145, 7
        %v166 = vsel %vm154, %v164, %v165
        %v175 = vsel %vm154, %v138, %v155
        %v176 = vsel %vm154, %v140, %v158
        %v177 = vsel %vm154, %v142, %v161
        %v178 = vsel %vm154, %v144, %v164
        %vm179 = vcmask 1046528
        %v180 = vrot.slane %v138, 1
        %v181 = vrot.slane %v139, 1
        %v182 = vsel %vm179, %v180, %v181
        %v183 = vrot.slane %v140, 1
        %v184 = vrot.slane %v141, 1
        %v185 = vsel %vm179, %v183, %v184
        %v186 = vrot.slane %v142, 1
        %v187 = vrot.slane %v143, 1
        %v188 = vsel %vm179, %v186, %v187
        %v189 = vrot.slane %v144, 1
        %v190 = vrot.slane %v145, 1
        %v191 = vsel %vm179, %v189, %v190
        %v200 = vsel %vm179, %v181, %v139
        %v201 = vsel %vm179, %v184, %v141
        %v202 = vsel %vm179, %v187, %v143
        %v203 = vsel %vm179, %v190, %v145
        %204 = vrot.lane.b32.xlu0 %v138, 1
        %v205 = vpop.permute.xlu0 %204
        %206 = vrot.lane.b32.xlu0 %v139, 1
        %v207 = vpop.permute.xlu0 %206
        %208 = vrot.lane.b32.xlu0 %v140, 1
        %v209 = vpop.permute.xlu0 %208
        %210 = vrot.lane.b32.xlu0 %v141, 1
        %v211 = vpop.permute.xlu0 %210
        %212 = vrot.lane.b32.xlu0 %v142, 1
        %v213 = vpop.permute.xlu0 %212
        %214 = vrot.lane.b32.xlu0 %v143, 1
        %v215 = vpop.permute.xlu0 %214
        %216 = vrot.lane.b32.xlu0 %v144, 1
        %v217 = vpop.permute.xlu0 %216
        %218 = vrot.lane.b32.xlu0 %v145, 1
        %v219 = vpop.permute.xlu0 %218
        %vm228 = vcmask 7168
        %v229 = vsel %vm228, %v138, %v205
        %v230 = vsel %vm228, %v139, %v207
        %v231 = vsel %vm228, %v140, %v209
        %v232 = vsel %vm228, %v141, %v211
        %v233 = vsel %vm228, %v142, %v213
        %v234 = vsel %vm228, %v143, %v215
        %v235 = vsel %vm228, %v144, %v217
        %v236 = vsel %vm228, %v145, %v219
        %237 = vrot.lane.b32.xlu0 %v138, 127
        %v238 = vpop.permute.xlu0 %237
        %239 = vrot.lane.b32.xlu0 %v139, 127
        %v240 = vpop.permute.xlu0 %239
        %241 = vrot.lane.b32.xlu0 %v140, 127
        %v242 = vpop.permute.xlu0 %241
        %243 = vrot.lane.b32.xlu0 %v141, 127
        %v244 = vpop.permute.xlu0 %243
        %245 = vrot.lane.b32.xlu0 %v142, 127
        %v246 = vpop.permute.xlu0 %245
        %247 = vrot.lane.b32.xlu0 %v143, 127
        %v248 = vpop.permute.xlu0 %247
        %249 = vrot.lane.b32.xlu0 %v144, 127
        %v250 = vpop.permute.xlu0 %249
        %251 = vrot.lane.b32.xlu0 %v145, 127
        %v252 = vpop.permute.xlu0 %251
        %vm261 = vcmask 121856
        %v262 = vsel %vm261, %v238, %v138
        %v263 = vsel %vm261, %v240, %v139
        %v264 = vsel %vm261, %v242, %v140
        %v265 = vsel %vm261, %v244, %v141
        %v266 = vsel %vm261, %v246, %v142
        %v267 = vsel %vm261, %v248, %v143
        %v268 = vsel %vm261, %v250, %v144
        %v269 = vsel %vm261, %v252, %v145
        %v270 = vadd.f32 %v175, %v182
        %v271 = vadd.f32 %v157, %v200
        %v272 = vadd.f32 %v176, %v185
        %v273 = vadd.f32 %v160, %v201
        %v274 = vadd.f32 %v177, %v188
        %v275 = vadd.f32 %v163, %v202
        %v276 = vadd.f32 %v178, %v191
        %v277 = vadd.f32 %v166, %v203
        %v278 = vadd.f32 %v270, %v229
        %v279 = vadd.f32 %v271, %v230
        %v280 = vadd.f32 %v272, %v231
        %v281 = vadd.f32 %v273, %v232
        %v282 = vadd.f32 %v274, %v233
        %v283 = vadd.f32 %v275, %v234
        %v284 = vadd.f32 %v276, %v235
        %v285 = vadd.f32 %v277, %v236
        %v286 = vadd.f32 %v278, %v262
        %v287 = vadd.f32 %v279, %v263
        %v288 = vadd.f32 %v280, %v264
        %v289 = vadd.f32 %v281, %v265
        %v290 = vadd.f32 %v282, %v266
        %v291 = vadd.f32 %v283, %v267
        %v292 = vadd.f32 %v284, %v268
        %v293 = vadd.f32 %v285, %v269
        %v294 = vmul.f32 %v138, 4.0
        %v295 = vmul.f32 %v139, 4.0
        %v296 = vmul.f32 %v140, 4.0
        %v297 = vmul.f32 %v141, 4.0
        %v298 = vmul.f32 %v142, 4.0
        %v299 = vmul.f32 %v143, 4.0
        %v300 = vmul.f32 %v144, 4.0
        %v301 = vmul.f32 %v145, 4.0
        %v302 = vsub.f32 %v286, %v294
        %v303 = vsub.f32 %v287, %v295
        %v304 = vsub.f32 %v288, %v296
        %v305 = vsub.f32 %v289, %v297
        %v306 = vsub.f32 %v290, %v298
        %v307 = vsub.f32 %v291, %v299
        %v308 = vsub.f32 %v292, %v300
        %v309 = vsub.f32 %v293, %v301
        %v310 = vmul.f32 %v302, 0.25
        %v311 = vmul.f32 %v303, 0.25
        %v312 = vmul.f32 %v304, 0.25
        %v313 = vmul.f32 %v305, 0.25
        %v314 = vmul.f32 %v306, 0.25
        %v315 = vmul.f32 %v307, 0.25
        %v316 = vmul.f32 %v308, 0.25
        %v317 = vmul.f32 %v309, 0.25
        %vm318 = vcmask 130048
        %v319 = vsel %vm318, %v310, inf
        %320 = vmin.xlane.f32.xlu0 %v319
        %v321 = vpop.xlane.xlu0 %320
        %v322 = vsel %vm318, %v311, inf
        %323 = vmin.xlane.f32.xlu0 %v322
        %v324 = vpop.xlane.xlu0 %323
        %v325 = vsel %vm318, %v312, inf
        %326 = vmin.xlane.f32.xlu0 %v325
        %v327 = vpop.xlane.xlu0 %326
        %v328 = vsel %vm318, %v313, inf
        %329 = vmin.xlane.f32.xlu0 %v328
        %v330 = vpop.xlane.xlu0 %329
        %v331 = vsel %vm318, %v314, inf
        %332 = vmin.xlane.f32.xlu0 %v331
        %v333 = vpop.xlane.xlu0 %332
        %v334 = vsel %vm318, %v315, inf
        %335 = vmin.xlane.f32.xlu0 %v334
        %v336 = vpop.xlane.xlu0 %335
        %v337 = vsel %vm318, %v316, inf
        %338 = vmin.xlane.f32.xlu0 %v337
        %v339 = vpop.xlane.xlu0 %338
        %v340 = vsel %vm318, %v317, inf
        %341 = vmin.xlane.f32.xlu0 %v340
        %v342 = vpop.xlane.xlu0 %341
        %v343 = vmin.f32 %v321, %v324
        %v344 = vrot.slane %v343, 4
        %v345 = vmin.f32 %v343, %v344
        %v346 = vrot.slane %v345, 2
        %v347 = vmin.f32 %v345, %v346
        %v348 = vrot.slane %v347, 1
        %v349 = vmin.f32 %v347, %v348
        %v350 = vmin.f32 %v327, %v330
        %v351 = vrot.slane %v350, 4
        %v352 = vmin.f32 %v350, %v351
        %v353 = vrot.slane %v352, 2
        %v354 = vmin.f32 %v352, %v353
        %v355 = vrot.slane %v354, 1
        %v356 = vmin.f32 %v354, %v355
        %v357 = vmin.f32 %v333, %v336
        %v358 = vrot.slane %v357, 4
        %v359 = vmin.f32 %v357, %v358
        %v360 = vrot.slane %v359, 2
        %v361 = vmin.f32 %v359, %v360
        %v362 = vrot.slane %v361, 1
        %v363 = vmin.f32 %v361, %v362
        %v364 = vmin.f32 %v339, %v342
        %v365 = vrot.slane %v364, 4
        %v366 = vmin.f32 %v364, %v365
        %v367 = vrot.slane %v366, 2
        %v368 = vmin.f32 %v366, %v367
        %v369 = vrot.slane %v368, 1
        %v370 = vmin.f32 %v368, %v369
        %v371 = vsel %vm318, %v310, -inf
        %372 = vmax.xlane.f32.xlu0 %v371
        %v373 = vpop.xlane.xlu0 %372
        %v374 = vsel %vm318, %v311, -inf
        %375 = vmax.xlane.f32.xlu0 %v374
        %v376 = vpop.xlane.xlu0 %375
        %v377 = vsel %vm318, %v312, -inf
        %378 = vmax.xlane.f32.xlu0 %v377
        %v379 = vpop.xlane.xlu0 %378
        %v380 = vsel %vm318, %v313, -inf
        %381 = vmax.xlane.f32.xlu0 %v380
        %v382 = vpop.xlane.xlu0 %381
        %v383 = vsel %vm318, %v314, -inf
        %384 = vmax.xlane.f32.xlu0 %v383
        %v385 = vpop.xlane.xlu0 %384
        %v386 = vsel %vm318, %v315, -inf
        %387 = vmax.xlane.f32.xlu0 %v386
        %v388 = vpop.xlane.xlu0 %387
        %v389 = vsel %vm318, %v316, -inf
        %390 = vmax.xlane.f32.xlu0 %v389
        %v391 = vpop.xlane.xlu0 %390
        %v392 = vsel %vm318, %v317, -inf
        %393 = vmax.xlane.f32.xlu0 %v392
        %v394 = vpop.xlane.xlu0 %393
        %v395 = vmax.f32 %v373, %v376
        %v396 = vrot.slane %v395, 4
        %v397 = vmax.f32 %v395, %v396
        %v398 = vrot.slane %v397, 2
        %v399 = vmax.f32 %v397, %v398
        %v400 = vrot.slane %v399, 1
        %v401 = vmax.f32 %v399, %v400
        %v402 = vmax.f32 %v379, %v382
        %v403 = vrot.slane %v402, 4
        %v404 = vmax.f32 %v402, %v403
        %v405 = vrot.slane %v404, 2
        %v406 = vmax.f32 %v404, %v405
        %v407 = vrot.slane %v406, 1
        %v408 = vmax.f32 %v406, %v407
        %v409 = vmax.f32 %v385, %v388
        %v410 = vrot.slane %v409, 4
        %v411 = vmax.f32 %v409, %v410
        %v412 = vrot.slane %v411, 2
        %v413 = vmax.f32 %v411, %v412
        %v414 = vrot.slane %v413, 1
        %v415 = vmax.f32 %v413, %v414
        %v416 = vmax.f32 %v391, %v394
        %v417 = vrot.slane %v416, 4
        %v418 = vmax.f32 %v416, %v417
        %v419 = vrot.slane %v418, 2
        %v420 = vmax.f32 %v418, %v419
        %v421 = vrot.slane %v420, 1
        %v422 = vmax.f32 %v420, %v421
        %v423 = vsel %vm318, %v138, inf
        %424 = vmin.xlane.f32.xlu0 %v423
        %v425 = vpop.xlane.xlu0 %424
        %v426 = vsel %vm318, %v139, inf
        %427 = vmin.xlane.f32.xlu0 %v426
        %v428 = vpop.xlane.xlu0 %427
        %v429 = vsel %vm318, %v140, inf
        %430 = vmin.xlane.f32.xlu0 %v429
        %v431 = vpop.xlane.xlu0 %430
        %v432 = vsel %vm318, %v141, inf
        %433 = vmin.xlane.f32.xlu0 %v432
        %v434 = vpop.xlane.xlu0 %433
        %v435 = vsel %vm318, %v142, inf
        %436 = vmin.xlane.f32.xlu0 %v435
        %v437 = vpop.xlane.xlu0 %436
        %v438 = vsel %vm318, %v143, inf
        %439 = vmin.xlane.f32.xlu0 %v438
        %v440 = vpop.xlane.xlu0 %439
        %v441 = vsel %vm318, %v144, inf
        %442 = vmin.xlane.f32.xlu0 %v441
        %v443 = vpop.xlane.xlu0 %442
        %v444 = vsel %vm318, %v145, inf
        %445 = vmin.xlane.f32.xlu0 %v444
        %v446 = vpop.xlane.xlu0 %445
        %v447 = vmin.f32 %v425, %v428
        %v448 = vrot.slane %v447, 4
        %v449 = vmin.f32 %v447, %v448
        %v450 = vrot.slane %v449, 2
        %v451 = vmin.f32 %v449, %v450
        %v452 = vrot.slane %v451, 1
        %v453 = vmin.f32 %v451, %v452
        %v454 = vmin.f32 %v431, %v434
        %v455 = vrot.slane %v454, 4
        %v456 = vmin.f32 %v454, %v455
        %v457 = vrot.slane %v456, 2
        %v458 = vmin.f32 %v456, %v457
        %v459 = vrot.slane %v458, 1
        %v460 = vmin.f32 %v458, %v459
        %v461 = vmin.f32 %v437, %v440
        %v462 = vrot.slane %v461, 4
        %v463 = vmin.f32 %v461, %v462
        %v464 = vrot.slane %v463, 2
        %v465 = vmin.f32 %v463, %v464
        %v466 = vrot.slane %v465, 1
        %v467 = vmin.f32 %v465, %v466
        %v468 = vmin.f32 %v443, %v446
        %v469 = vrot.slane %v468, 4
        %v470 = vmin.f32 %v468, %v469
        %v471 = vrot.slane %v470, 2
        %v472 = vmin.f32 %v470, %v471
        %v473 = vrot.slane %v472, 1
        %v474 = vmin.f32 %v472, %v473
        %v475 = vsel %vm318, %v138, -inf
        %476 = vmax.xlane.f32.xlu0 %v475
        %v477 = vpop.xlane.xlu0 %476
        %v478 = vsel %vm318, %v139, -inf
        %479 = vmax.xlane.f32.xlu0 %v478
        %v480 = vpop.xlane.xlu0 %479
        %v481 = vsel %vm318, %v140, -inf
        %482 = vmax.xlane.f32.xlu0 %v481
        %v483 = vpop.xlane.xlu0 %482
        %v484 = vsel %vm318, %v141, -inf
        %485 = vmax.xlane.f32.xlu0 %v484
        %v486 = vpop.xlane.xlu0 %485
        %v487 = vsel %vm318, %v142, -inf
        %488 = vmax.xlane.f32.xlu0 %v487
        %v489 = vpop.xlane.xlu0 %488
        %v490 = vsel %vm318, %v143, -inf
        %491 = vmax.xlane.f32.xlu0 %v490
        %v492 = vpop.xlane.xlu0 %491
        %v493 = vsel %vm318, %v144, -inf
        %494 = vmax.xlane.f32.xlu0 %v493
        %v495 = vpop.xlane.xlu0 %494
        %v496 = vsel %vm318, %v145, -inf
        %497 = vmax.xlane.f32.xlu0 %v496
        %v498 = vpop.xlane.xlu0 %497
        %v499 = vmax.f32 %v477, %v480
        %v500 = vrot.slane %v499, 4
        %v501 = vmax.f32 %v499, %v500
        %v502 = vrot.slane %v501, 2
        %v503 = vmax.f32 %v501, %v502
        %v504 = vrot.slane %v503, 1
        %v505 = vmax.f32 %v503, %v504
        %v506 = vmax.f32 %v483, %v486
        %v507 = vrot.slane %v506, 4
        %v508 = vmax.f32 %v506, %v507
        %v509 = vrot.slane %v508, 2
        %v510 = vmax.f32 %v508, %v509
        %v511 = vrot.slane %v510, 1
        %v512 = vmax.f32 %v510, %v511
        %v513 = vmax.f32 %v489, %v492
        %v514 = vrot.slane %v513, 4
        %v515 = vmax.f32 %v513, %v514
        %v516 = vrot.slane %v515, 2
        %v517 = vmax.f32 %v515, %v516
        %v518 = vrot.slane %v517, 1
        %v519 = vmax.f32 %v517, %v518
        %v520 = vmax.f32 %v495, %v498
        %v521 = vrot.slane %v520, 4
        %v522 = vmax.f32 %v520, %v521
        %v523 = vrot.slane %v522, 2
        %v524 = vmax.f32 %v522, %v523
        %v525 = vrot.slane %v524, 1
        %v526 = vmax.f32 %v524, %v525
        %v527 = vsub.f32 %v401, %v349
        %v528 = vsub.f32 %v408, %v356
        %v529 = vsub.f32 %v415, %v363
        %v530 = vsub.f32 %v422, %v370
        %vm531 = vcmp.eq.f32.partialorder %v527, 0.0
        %vm532 = vcmp.eq.f32.partialorder %v528, 0.0
        %vm533 = vcmp.eq.f32.partialorder %v529, 0.0
        %vm534 = vcmp.eq.f32.partialorder %v530, 0.0
        %v535 = vsel %vm531, 1.0, %v527
        %v536 = vsel %vm532, 1.0, %v528
        %v537 = vsel %vm533, 1.0, %v529
        %v538 = vsel %vm534, 1.0, %v530
        %v539 = vsub.f32 %v505, %v453
        %v540 = vsub.f32 %v512, %v460
        %v541 = vsub.f32 %v519, %v467
        %v542 = vsub.f32 %v526, %v474
        %v543 = vrcp.pop %v535
        %v544 = vrcp.pop %v536
        %v545 = vrcp.pop %v537
        %v546 = vrcp.pop %v538
        %v547 = vmul.f32 %v539, %v543
        %v548 = vmul.f32 %v540, %v544
        %v549 = vmul.f32 %v541, %v545
        %v550 = vmul.f32 %v542, %v546
        %v551 = vsub.f32 %v310, %v349
        %v552 = vsub.f32 %v311, %v349
        %v553 = vsub.f32 %v312, %v356
        %v554 = vsub.f32 %v313, %v356
        %v555 = vsub.f32 %v314, %v363
        %v556 = vsub.f32 %v315, %v363
        %v557 = vsub.f32 %v316, %v370
        %v558 = vsub.f32 %v317, %v370
        %v559 = vmul.f32 %v547, %v551
        %v560 = vmul.f32 %v547, %v552
        %v561 = vmul.f32 %v548, %v553
        %v562 = vmul.f32 %v548, %v554
        %v563 = vmul.f32 %v549, %v555
        %v564 = vmul.f32 %v549, %v556
        %v565 = vmul.f32 %v550, %v557
        %v566 = vmul.f32 %v550, %v558
        %v567 = vsub.f32 %v138, %v559
        %v568 = vsub.f32 %v139, %v560
        %v569 = vsub.f32 %v140, %v561
        %v570 = vsub.f32 %v141, %v562
        %v571 = vsub.f32 %v142, %v563
        %v572 = vsub.f32 %v143, %v564
        %v573 = vsub.f32 %v144, %v565
        %v574 = vsub.f32 %v145, %v566
        %v575 = vsel %vm318, %v567, inf
        %576 = vmin.xlane.f32.xlu0 %v575
        %v577 = vpop.xlane.xlu0 %576
        %v578 = vsel %vm318, %v568, inf
        %579 = vmin.xlane.f32.xlu0 %v578
        %v580 = vpop.xlane.xlu0 %579
        %v581 = vsel %vm318, %v569, inf
        %582 = vmin.xlane.f32.xlu0 %v581
        %v583 = vpop.xlane.xlu0 %582
        %v584 = vsel %vm318, %v570, inf
        %585 = vmin.xlane.f32.xlu0 %v584
        %v586 = vpop.xlane.xlu0 %585
        %v587 = vsel %vm318, %v571, inf
        %588 = vmin.xlane.f32.xlu0 %v587
        %v589 = vpop.xlane.xlu0 %588
        %v590 = vsel %vm318, %v572, inf
        %591 = vmin.xlane.f32.xlu0 %v590
        %v592 = vpop.xlane.xlu0 %591
        %v593 = vsel %vm318, %v573, inf
        %594 = vmin.xlane.f32.xlu0 %v593
        %v595 = vpop.xlane.xlu0 %594
        %v596 = vsel %vm318, %v574, inf
        %597 = vmin.xlane.f32.xlu0 %v596
        %v598 = vpop.xlane.xlu0 %597
        %v599 = vmin.f32 %v577, %v580
        %v600 = vrot.slane %v599, 4
        %v601 = vmin.f32 %v599, %v600
        %v602 = vrot.slane %v601, 2
        %v603 = vmin.f32 %v601, %v602
        %v604 = vrot.slane %v603, 1
        %v605 = vmin.f32 %v603, %v604
        %v606 = vmin.f32 %v583, %v586
        %v607 = vrot.slane %v606, 4
        %v608 = vmin.f32 %v606, %v607
        %v609 = vrot.slane %v608, 2
        %v610 = vmin.f32 %v608, %v609
        %v611 = vrot.slane %v610, 1
        %v612 = vmin.f32 %v610, %v611
        %v613 = vmin.f32 %v589, %v592
        %v614 = vrot.slane %v613, 4
        %v615 = vmin.f32 %v613, %v614
        %v616 = vrot.slane %v615, 2
        %v617 = vmin.f32 %v615, %v616
        %v618 = vrot.slane %v617, 1
        %v619 = vmin.f32 %v617, %v618
        %v620 = vmin.f32 %v595, %v598
        %v621 = vrot.slane %v620, 4
        %v622 = vmin.f32 %v620, %v621
        %v623 = vrot.slane %v622, 2
        %v624 = vmin.f32 %v622, %v623
        %v625 = vrot.slane %v624, 1
        %v626 = vmin.f32 %v624, %v625
        %v627 = vsub.f32 %v567, %v605
        %v628 = vsub.f32 %v568, %v605
        %v629 = vsub.f32 %v569, %v612
        %v630 = vsub.f32 %v570, %v612
        %v631 = vsub.f32 %v571, %v619
        %v632 = vsub.f32 %v572, %v619
        %v633 = vsub.f32 %v573, %v626
        %v634 = vsub.f32 %v574, %v626
        %635 = vst.msk [vmem:[%s135] sm:$0xff] %vm318, %v627
        %636 = vst.msk [vmem:[%s135 + $0x8] sm:$0xff] %vm318, %v628
        %637 = vst.msk [vmem:[%s135 + $0x10] sm:$0xff] %vm318, %v629
        %638 = vst.msk [vmem:[%s135 + $0x18] sm:$0xff] %vm318, %v630
        %639 = vst.msk [vmem:[%s135 + $0x20] sm:$0xff] %vm318, %v631
        %640 = vst.msk [vmem:[%s135 + $0x28] sm:$0xff] %vm318, %v632
        %641 = vst.msk [vmem:[%s135 + $0x30] sm:$0xff] %vm318, %v633
        %642 = vst.msk [vmem:[%s135 + $0x38] sm:$0xff] %vm318, %v634
        %s643 = sand.u32 %s52, 1
        %s644 = scalar_lea.sflag [#allocation4], %s643
        %s645 = sand.u32 %s52, 1
        %s646 = smul.addr %s645, 64
        %s647 = scalar_lea.vmem [#allocation5], %s646
        // Predicated region
        $region29: #{tpu_custom_call.1} parent=23 // pred_check
          %p648 = pneg %p62
        $region30: #{tpu_custom_call.1} parent=23 // pred_check_branch
          %650 = sbr.rel (%p648) target = $region32
        $region31: #{tpu_custom_call.1} parent=23 // pred_region
          %s651 = smul.u32 4, %s18
          %s653 = ssub.s32 1024, 1024
          %654 = vsyncadd %s644, %s653
          %s655 = smul.addr %s651, 2
          %s656 = smul.addr %s655, 128
          %s657 = scalar_lea.hbm %s1, %s656
          %s658 = sshll.u32 %s647, 4
          %s659 = int_to_ptr.vmem [resolvable:$true] %s658
          %664 = dma.vmem_to_hbm [thread:$0]  %s659, 1024, %s657, %s644, 128, 128, 8
        $region32: #{tpu_custom_call.1} parent=23 // pred_fallthru
          _
      $region24: #{tpu_custom_call.1} parent=5 // pred_fallthru
        _
      %p665 = scmp.le.s32.totalorder 2, %s13
      // Predicated region
      $region33: #{tpu_custom_call.1} parent=5 // pred_check
        %p666 = pneg %p665
      $region34: #{tpu_custom_call.1} parent=5 // pred_check_branch
        %668 = sbr.rel (%p666) target = $region36
      $region35: #{tpu_custom_call.1} parent=5 // pred_region
        %s669 = ssub.s32 %s13, 2
        // Predicated region
        $region37: #{tpu_custom_call.1} parent=35 // pred_check
          %p670 = pneg %p68
        $region38: #{tpu_custom_call.1} parent=35 // pred_check_branch
          %672 = sbr.rel (%p670) target = $region40
        $region39: #{tpu_custom_call.1} parent=35 // pred_region
          %s673 = sand.u32 %s53, 1
          %s674 = scalar_lea.sflag [#allocation4], %s673
          %s675 = sand.u32 %s53, 1
          %s676 = smul.addr %s675, 64
          %s677 = scalar_lea.vmem [#allocation5], %s676
          %678 = dma.done %s674, 1024
        $region40: #{tpu_custom_call.1} parent=35 // pred_fallthru
          _
      $region36: #{tpu_custom_call.1} parent=5 // pred_fallthru
        _
    $region6: #{tpu_custom_call.1} parent=1 // loop_footer
      %s17 = sadd.s32 1, %s13
    $region7: #{tpu_custom_call.1} parent=1 // loop_footer_branch
      %12 = sbr.rel target = $region3
    $region8: #{tpu_custom_call.1} parent=1 // loop_exit
      _
    %679 = vsyncpa [#allocation3], 1
    %s680 = scalar_lea.sflag [#allocation3], 1
    %681 = vsyncpa %s680, 1
    %682 = vsyncpa [#allocation4], 1
    %s683 = scalar_lea.sflag [#allocation4], 1
    %684 = vsyncpa %s683, 1

</llo_original>
